<compile_context>
chip_gen: v7x
topology: tpu7x:2x2x1
jax: 0.10.0
libtpu: 0.0.40
codegen_flags: <defaults>
</compile_context>

<pallas_src>
import functools

import jax
import jax.numpy as jnp
from jax.experimental import pallas as pl
from jax.experimental.pallas import tpu as pltpu


def _round_up(n, m):
    return ((n + m - 1) // m) * m


def _sublane(itemsize):
    # sublane packing granularity per dtype width (f32 -> 8, bf16 -> 16, int8 -> 32)
    return 8 if itemsize >= 4 else (16 if itemsize == 2 else 32)


def _x_lane(n):
    # lane (minormost) extent as physically stored in VMEM
    return max(_round_up(n, 128), 128)


def _vmem_capacity_bytes():
    try:
        info = pltpu.get_tpu_info()
        for name in ("vmem_capacity_bytes", "vmem_bytes", "vmem_size_bytes"):
            cap = getattr(info, name, None)
            if cap:
                return int(cap)
    except Exception:
        pass
    return 64 * 1024 * 1024  # conservative (v7x-sized) fallback


def _pick_tiles(B, C, HW, itemsize, budget):
    """Pick (batch_tile, spatial_tile) with padding-aware VMEM accounting.

    spatial_tile is either the full HW (when HW <= 128 or HW % 128 == 0) or a
    multiple of 128 < HW; the ragged tail is masked in-kernel (no HBM padding).
    """
    c_pad = _round_up(C, _sublane(itemsize))

    def x_buf_bytes(tb, thw):  # one pipeline buffer, lane/sublane padded
        return tb * c_pad * _x_lane(thw) * itemsize

    if B <= 8:
        cands = [B]
    else:
        # Keep grid[0] >= 2 when B > 8 so the "parallel" batch axis can shard
        # across v7x's two TensorCores.
        cap = min(128, max(8, _round_up(_round_up(B, 8) // 2, 8)))
        cands = sorted({t for t in (cap, 64, 32, 16, 8) if 8 <= t <= cap},
                       reverse=True)

    full_ok = (HW <= 128) or (HW % 128 == 0)
    for tb in cands:
        if full_ok and x_buf_bytes(tb, HW) <= budget:
            return tb, HW
    if HW > 128:
        for tb in cands:
            thw = (budget // (tb * c_pad * itemsize)) // 128 * 128
            thw = min(thw, (HW // 128) * 128)
            if thw >= 128:
                return tb, int(thw)
    # Minimum-footprint fallback: smallest batch tile, one lane-tile of spatial.
    # TODO(synk): very large C may still overflow VMEM here; would need channel tiling.
    return cands[-1], (HW if HW <= 128 else 128)


def _partial_spatial_sum(x_ref, k, *, hw, thw, cw, n_steps):
    """f32 spatial partial sum for this grid step as a (tb, C, cw) tile.

    The sum over 128-lane chunks is plain VALU adds; the final cw->1 fold is
    deferred to the finalize (one XLU reduce per batch tile, amortized).
    """
    n_chunks = thw // cw
    base = k * thw                      # dynamic spatial offset of this step
    last_base = (n_steps - 1) * thw     # static offset of the last step
    s = None
    for j in range(n_chunks):
        chunk = x_ref[:, :, j * cw:(j + 1) * cw].astype(jnp.float32)
        if last_base + (j + 1) * cw > hw:
            # Ragged spatial tail: the partial last block's OOB lanes hold
            # stale VMEM garbage -> zero them before accumulating.
            pos = jax.lax.broadcasted_iota(jnp.int32, chunk.shape, 2) + (base + j * cw)
            chunk = jnp.where(pos < hw, chunk, 0.0)
        s = chunk if s is None else s + chunk
    return s


def _fused_head_kernel(x_ref, w_ref, b_ref, o_ref, *scratch,
                       hw, thw, cw, n_steps, inv_hw):
    # x_ref: (tb, C, thw)  w_ref: (C, NCpad)  b_ref: (1, NCpad)  o_ref: (tb, NCpad)
    k = pl.program_id(1)
    s = _partial_spatial_sum(x_ref, k, hw=hw, thw=thw, cw=cw, n_steps=n_steps)

    def finalize(total):
        # TODO(synk): for tiny feature maps (HW < 128, NCHW) this single
        # cross-lane fold per loaded vreg can still be XLU-bound; an NHWC input
        # or an MXU ones-vector reduce would remove it.
        pooled = jnp.sum(total, axis=-1) * inv_hw                    # (tb, C) f32 mean
        out = jnp.dot(pooled.astype(w_ref.dtype), w_ref[...],
                      preferred_element_type=jnp.float32)            # MXU, small GEMM
        o_ref[...] = (out + b_ref[...].astype(jnp.float32)).astype(o_ref.dtype)

    if n_steps == 1:
        finalize(s)
    else:
        acc_ref = scratch[0]

        @pl.when(k == 0)
        def _():
            acc_ref[...] = jnp.zeros_like(acc_ref)

        acc_ref[...] += s

        @pl.when(k == n_steps - 1)
        def _():
            finalize(acc_ref[...])


def _pool_kernel(x_ref, o_ref, *scratch, hw, thw, cw, n_steps, inv_hw):
    # Pooling-only kernel (fallback when the weight is too large for VMEM).
    k = pl.program_id(1)
    s = _partial_spatial_sum(x_ref, k, hw=hw, thw=thw, cw=cw, n_steps=n_steps)

    def finalize(total):
        o_ref[...] = (jnp.sum(total, axis=-1) * inv_hw).astype(o_ref.dtype)

    if n_steps == 1:
        finalize(s)
    else:
        acc_ref = scratch[0]

        @pl.when(k == 0)
        def _():
            acc_ref[...] = jnp.zeros_like(acc_ref)

        acc_ref[...] += s

        @pl.when(k == n_steps - 1)
        def _():
            finalize(acc_ref[...])


def classification_head(x_nchw, weight, bias):
    """AdaptiveAvgPool2d((1,1)) -> flatten -> Linear.

    x_nchw: (B, C, H, W); weight: (num_classes, C); bias: (num_classes,).
    Returns (B, num_classes) logits in x_nchw.dtype.
    """
    B, C, H, W = x_nchw.shape
    num_classes = weight.shape[0]
    HW = H * W
    x_item = jnp.dtype(x_nchw.dtype).itemsize
    w_item = jnp.dtype(weight.dtype).itemsize

    vmem_cap = _vmem_capacity_bytes()
    x_budget = (12 << 20) if vmem_cap >= (100 << 20) else (5 << 20)

    tb, thw = _pick_tiles(B, C, HW, x_item, x_budget)
    cw = min(thw, 128)
    n_steps = int(pl.cdiv(HW, thw))
    grid = (int(pl.cdiv(B, tb)), n_steps)
    nc_pad = _round_up(num_classes, 128)
    inv_hw = float(1.0 / HW)

    # (B, C, H, W) -> (B, C, H*W) is a free (contiguous) reshape.  NO jnp.pad
    # of x: that would force an extra full HBM read+write of the activation.
    x3 = x_nchw.reshape(B, C, HW)

    # Padding-aware per-buffer VMEM sizes.
    x_buf = tb * _round_up(C, _sublane(x_item)) * _x_lane(thw) * x_item
    acc_buf = 0 if n_steps == 1 else tb * _round_up(C, 8) * _x_lane(cw) * 4
    w_buf = _round_up(C, _sublane(w_item)) * nc_pad * w_item
    b_buf = 8 * nc_pad * w_item

    x_spec = pl.BlockSpec((tb, C, thw), lambda i, k: (i, 0, k))
    scratch = [] if n_steps == 1 else [pltpu.VMEM((tb, C, cw), jnp.float32)]
    dim_sem = ("parallel", "arbitrary")

    # Fuse the Linear only if the padded weight comfortably fits VMEM alongside
    # the streamed x tiles; otherwise pool in Pallas and let XLA do the GEMM.
    fuse_fc = 2 * (w_buf + b_buf) <= min(16 << 20, vmem_cap // 4)

    if fuse_fc:
        w_t = jnp.pad(weight.T, ((0, 0), (0, nc_pad - num_classes)))           # (C, NCpad)
        b2 = jnp.pad(bias.reshape(1, num_classes),
                     ((0, 0), (0, nc_pad - num_classes)))                      # (1, NCpad)
        out_buf = _round_up(tb, 8) * nc_pad * x_item
        # Conservative: count weight/bias double-buffered even though
        # single-buffering is requested below.
        vmem_need = 2 * x_buf + 2 * w_buf + 2 * b_buf + 2 * out_buf + acc_buf
        vmem_limit = int(min(max(vmem_need + (4 << 20), 32 << 20),
                             int(vmem_cap * 0.9)))
        cost = pl.CostEstimate(
            flops=B * C * HW + 2 * B * C * num_classes,
            transcendentals=0,
            bytes_accessed=(B * C * HW * x_item + C * num_classes * w_item
                            + num_classes * w_item + B * num_classes * x_item))
        kernel = functools.partial(_fused_head_kernel, hw=HW, thw=thw, cw=cw,
                                   n_steps=n_steps, inv_hw=inv_hw)

        def _const_spec(shape, single_buffer):
            # Operand whose block never changes across the grid: single-buffer
            # it (double-buffering a constant block only wastes VMEM).
            index_map = lambda i, k: (0,) * len(shape)
            if single_buffer and hasattr(pl, "Buffered"):
                try:
                    return pl.BlockSpec(shape, index_map,
                                        pipeline_mode=pl.Buffered(1))
                except TypeError:  # older JAX without pipeline_mode
                    pass
            return pl.BlockSpec(shape, index_map)

        def _run(single_buffer):
            return pl.pallas_call(
                kernel,
                out_shape=jax.ShapeDtypeStruct((B, nc_pad), x_nchw.dtype),
                grid_spec=pltpu.PrefetchScalarGridSpec(
                    num_scalar_prefetch=0,
                    grid=grid,
                    in_specs=[x_spec,
                              _const_spec((C, nc_pad), single_buffer),
                              _const_spec((1, nc_pad), single_buffer)],
                    out_specs=pl.BlockSpec((tb, nc_pad), lambda i, k: (i, 0)),
                    scratch_shapes=scratch),
                compiler_params=pltpu.CompilerParams(
                    dimension_semantics=dim_sem, vmem_limit_bytes=vmem_limit),
                cost_estimate=cost,
            )(x3, w_t, b2)

        try:
            out_padded = _run(True)
        except Exception:
            # This JAX/Mosaic rejected single-buffered constants; the VMEM
            # budget already covers the default double-buffered layout.
            out_padded = _run(False)
        return out_padded[:, :num_classes]

    # Fallback: pooling-only Pallas kernel, Linear in XLA (huge class counts).
    out_buf = _round_up(tb, 8) * _x_lane(C) * 4
    vmem_need = 2 * x_buf + 2 * out_buf + acc_buf
    vmem_limit = int(min(max(vmem_need + (4 << 20), 32 << 20),
                         int(vmem_cap * 0.9)))
    cost = pl.CostEstimate(flops=B * C * HW, transcendentals=0,
                           bytes_accessed=B * C * HW * x_item + B * C * 4)
    kernel = functools.partial(_pool_kernel, hw=HW, thw=thw, cw=cw,
                               n_steps=n_steps, inv_hw=inv_hw)
    pooled = pl.pallas_call(
        kernel,
        out_shape=jax.ShapeDtypeStruct((B, C), jnp.float32),
        grid_spec=pltpu.PrefetchScalarGridSpec(
            num_scalar_prefetch=0,
            grid=grid,
            in_specs=[x_spec],
            out_specs=pl.BlockSpec((tb, C), lambda i, k: (i, 0)),
            scratch_shapes=scratch),
        compiler_params=pltpu.CompilerParams(
            dimension_semantics=dim_sem, vmem_limit_bytes=vmem_limit),
        cost_estimate=cost,
    )(x3)
    logits = pooled @ weight.T.astype(jnp.float32) + bias.astype(jnp.float32)
    return logits.astype(x_nchw.dtype)


if __name__ == "__main__":
    # Small shapes consistent with the module's forward:
    # batch=2, in_channels=4, spatial=16x16, num_classes=10
    B, C, H, W = 2, 4, 16, 16
    num_classes = 10

    key = jax.random.PRNGKey(0)
    kx, kw, kb = jax.random.split(key, 3)

    x = jax.random.normal(kx, (B, C, H, W), dtype=jnp.float32)
    bound = 1.0 / float(C) ** 0.5
    weight = jax.random.uniform(kw, (num_classes, C), jnp.float32, -bound, bound)
    bias = jax.random.uniform(kb, (num_classes,), jnp.float32, -bound, bound)

    out = classification_head(x, weight, bias)
    out = jax.block_until_ready(out)

    # Pure-JAX reference.
    pooled_ref = jnp.mean(x, axis=(2, 3))           # (B, C)
    ref = pooled_ref @ weight.T + bias               # (B, num_classes)
    assert out.shape == (B, num_classes)
    assert jnp.allclose(out, ref, atol=1e-5, rtol=1e-5)

    print("KERNEL_OK")
</pallas_src>

<mosaic_0001>
module attributes {stable_mosaic.version = 11 : i64} {
  func.func @_fused_head_kernel(%arg0: i32, %arg1: i32, %arg2: memref<2x4x256xf32, #tpu.memory_space<vmem>>, %arg3: memref<4x128xf32, #tpu.memory_space<vmem>>, %arg4: memref<1x128xf32, #tpu.memory_space<vmem>>, %arg5: memref<2x128xf32, #tpu.memory_space<vmem>>) attributes {dimension_semantics = [#tpu.dimension_semantics<parallel>, #tpu.dimension_semantics<arbitrary>], iteration_bounds = array<i64: 1, 1>, scalar_prefetch = 0 : i64, scratch_operands = 0 : i64, tpu.core_type = #tpu.core_type<tc>, window_params = [{transform_indices = @transform_0, window_bounds = array<i64: 2, 4, 256>}, {pipeline_mode = #tpu.pipeline_mode<synchronous>, transform_indices = @transform_1, window_bounds = array<i64: 4, 128>}, {pipeline_mode = #tpu.pipeline_mode<synchronous>, transform_indices = @transform_2, window_bounds = array<i64: 1, 128>}, {transform_indices = @transform_3, window_bounds = array<i64: 2, 128>}]} {
    %c0 = arith.constant 0 : index
    %c0_0 = arith.constant 0 : index
    %c0_1 = arith.constant 0 : index
    %0 = vector.load %arg2[%c0, %c0_0, %c0_1] : memref<2x4x256xf32, #tpu.memory_space<vmem>>, vector<2x4x128xf32>
    %c0_2 = arith.constant 0 : index
    %c0_3 = arith.constant 0 : index
    %c128 = arith.constant 128 : index
    %1 = vector.load %arg2[%c0_2, %c0_3, %c128] : memref<2x4x256xf32, #tpu.memory_space<vmem>>, vector<2x4x128xf32>
    %2 = arith.addf %0, %1 : vector<2x4x128xf32>
    %cst = arith.constant dense<0.000000e+00> : vector<2x4xf32>
    %3 = vector.multi_reduction <add>, %2, %cst [2] : vector<2x4x128xf32> to vector<2x4xf32>
    %cst_4 = arith.constant 3.906250e-03 : f32
    %4 = vector.broadcast %cst_4 : f32 to vector<2x4xf32>
    %5 = arith.mulf %3, %4 : vector<2x4xf32>
    %c0_5 = arith.constant 0 : index
    %c0_6 = arith.constant 0 : index
    %6 = vector.load %arg3[%c0_5, %c0_6] : memref<4x128xf32, #tpu.memory_space<vmem>>, vector<4x128xf32>
    %cst_7 = arith.constant dense<0.000000e+00> : vector<2x128xf32>
    %7 = tpu.matmul %5, %6, %cst_7 {dimension_numbers = #tpu.dot_dimension_numbers<[1], [0], [0], [1], [0, 0, 1, 1], [], []>} : vector<2x4xf32>, vector<4x128xf32>, vector<2x128xf32> -> vector<2x128xf32>
    %c0_8 = arith.constant 0 : index
    %c0_9 = arith.constant 0 : index
    %8 = vector.load %arg4[%c0_8, %c0_9] : memref<1x128xf32, #tpu.memory_space<vmem>>, vector<1x128xf32>
    %9 = vector.broadcast %8 : vector<1x128xf32> to vector<2x128xf32>
    %10 = arith.addf %7, %9 : vector<2x128xf32>
    %c0_10 = arith.constant 0 : index
    %c0_11 = arith.constant 0 : index
    %11 = vector.load %arg5[%c0_10, %c0_11] : memref<2x128xf32, #tpu.memory_space<vmem>>, vector<2x128xf32>
    tpu.vector_store %arg5[%c0_10, %c0_11], %10 {strides = array<i32>} : memref<2x128xf32, #tpu.memory_space<vmem>>, vector<2x128xf32>,
    return
  }
  func.func @transform_0(%arg0: i32, %arg1: i32) -> (i32, i32, i32) {
    %c0_i32 = arith.constant 0 : i32
    %c0_i32_0 = arith.constant 0 : i32
    return %arg0, %c0_i32, %arg1 : i32, i32, i32
  }
  func.func @transform_1(%arg0: i32, %arg1: i32) -> (i32, i32) {
    %c0_i32 = arith.constant 0 : i32
    %c0_i32_0 = arith.constant 0 : i32
    %c0_i32_1 = arith.constant 0 : i32
    return %c0_i32, %c0_i32_0 : i32, i32
  }
  func.func @transform_2(%arg0: i32, %arg1: i32) -> (i32, i32) {
    %c0_i32 = arith.constant 0 : i32
    %c0_i32_0 = arith.constant 0 : i32
    %c0_i32_1 = arith.constant 0 : i32
    return %c0_i32, %c0_i32_0 : i32, i32
  }
  func.func @transform_3(%arg0: i32, %arg1: i32) -> (i32, i32) {
    %c0_i32 = arith.constant 0 : i32
    %c0_i32_0 = arith.constant 0 : i32
    return %arg0, %c0_i32 : i32, i32
  }
}

module attributes {stable_mosaic.version = 11 : i64} {
  func.func @_fused_head_kernel(%arg0: i32, %arg1: i32, %arg2: memref<2x4x256xf32, #tpu.memory_space<vmem>>, %arg3: memref<4x128xf32, #tpu.memory_space<vmem>>, %arg4: memref<1x128xf32, #tpu.memory_space<vmem>>, %arg5: memref<2x128xf32, #tpu.memory_space<vmem>>) attributes {dimension_semantics = [#tpu.dimension_semantics<parallel>, #tpu.dimension_semantics<arbitrary>], iteration_bounds = array<i64: 1, 1>, scalar_prefetch = 0 : i64, scratch_operands = 0 : i64, tpu.core_type = #tpu.core_type<tc>, window_params = [{transform_indices = @transform_0, window_bounds = array<i64: 2, 4, 256>}, {pipeline_mode = #tpu.pipeline_mode<synchronous>, transform_indices = @transform_1, window_bounds = array<i64: 4, 128>}, {pipeline_mode = #tpu.pipeline_mode<synchronous>, transform_indices = @transform_2, window_bounds = array<i64: 1, 128>}, {transform_indices = @transform_3, window_bounds = array<i64: 2, 128>}]} {
    %c0 = arith.constant 0 : index
    %c0_0 = arith.constant 0 : index
    %c0_1 = arith.constant 0 : index
    %0 = vector.load %arg2[%c0, %c0_0, %c0_1] : memref<2x4x256xf32, #tpu.memory_space<vmem>>, vector<2x4x128xf32>
    %c0_2 = arith.constant 0 : index
    %c0_3 = arith.constant 0 : index
    %c128 = arith.constant 128 : index
    %1 = vector.load %arg2[%c0_2, %c0_3, %c128] : memref<2x4x256xf32, #tpu.memory_space<vmem>>, vector<2x4x128xf32>
    %2 = arith.addf %0, %1 : vector<2x4x128xf32>
    %cst = arith.constant dense<0.000000e+00> : vector<2x4xf32>
    %3 = vector.multi_reduction <add>, %2, %cst [2] : vector<2x4x128xf32> to vector<2x4xf32>
    %cst_4 = arith.constant 3.906250e-03 : f32
    %4 = vector.broadcast %cst_4 : f32 to vector<2x4xf32>
    %5 = arith.mulf %3, %4 : vector<2x4xf32>
    %c0_5 = arith.constant 0 : index
    %c0_6 = arith.constant 0 : index
    %6 = vector.load %arg3[%c0_5, %c0_6] : memref<4x128xf32, #tpu.memory_space<vmem>>, vector<4x128xf32>
    %cst_7 = arith.constant dense<0.000000e+00> : vector<2x128xf32>
    %7 = tpu.matmul %5, %6, %cst_7 {dimension_numbers = #tpu.dot_dimension_numbers<[1], [0], [0], [1], [0, 0, 1, 1], [], []>} : vector<2x4xf32>, vector<4x128xf32>, vector<2x128xf32> -> vector<2x128xf32>
    %c0_8 = arith.constant 0 : index
    %c0_9 = arith.constant 0 : index
    %8 = vector.load %arg4[%c0_8, %c0_9] : memref<1x128xf32, #tpu.memory_space<vmem>>, vector<1x128xf32>
    %9 = vector.broadcast %8 : vector<1x128xf32> to vector<2x128xf32>
    %10 = arith.addf %7, %9 : vector<2x128xf32>
    %c0_10 = arith.constant 0 : index
    %c0_11 = arith.constant 0 : index
    %11 = vector.load %arg5[%c0_10, %c0_11] : memref<2x128xf32, #tpu.memory_space<vmem>>, vector<2x128xf32>
    tpu.vector_store %arg5[%c0_10, %c0_11], %10 {strides = array<i32>} : memref<2x128xf32, #tpu.memory_space<vmem>>, vector<2x128xf32>,
    return
  }
  func.func @transform_0(%arg0: i32, %arg1: i32) -> (i32, i32, i32) {
    %c0_i32 = arith.constant 0 : i32
    %c0_i32_0 = arith.constant 0 : i32
    return %arg0, %c0_i32, %arg1 : i32, i32, i32
  }
  func.func @transform_1(%arg0: i32, %arg1: i32) -> (i32, i32) {
    %c0_i32 = arith.constant 0 : i32
    %c0_i32_0 = arith.constant 0 : i32
    %c0_i32_1 = arith.constant 0 : i32
    return %c0_i32, %c0_i32_0 : i32, i32
  }
  func.func @transform_2(%arg0: i32, %arg1: i32) -> (i32, i32) {
    %c0_i32 = arith.constant 0 : i32
    %c0_i32_0 = arith.constant 0 : i32
    %c0_i32_1 = arith.constant 0 : i32
    return %c0_i32, %c0_i32_0 : i32, i32
  }
  func.func @transform_3(%arg0: i32, %arg1: i32) -> (i32, i32) {
    %c0_i32 = arith.constant 0 : i32
    %c0_i32_0 = arith.constant 0 : i32
    return %arg0, %c0_i32 : i32, i32
  }
}

</mosaic_0001>

<llo_original>
// kernel: tpu_custom_call.1
$region0: #{tpu_custom_call.1}
  #allocation0 [shape = 'u32[]', space=smem, size = 0x4, offset = 0x4, fixed_abs, tag = 'smem constant byte address 0x4 - core index']
  #allocation1 [shape = 'u32[144,128]{1,0:T(1,128)}', space=vmem, size = 0x12000, scoped, tag = 'internal scratch']
  %s0 = inlined_call_operand.hbm [shape: f32[2,4,256], index: 0, kind: input, shape index: {}]
  %s1 = inlined_call_operand.hbm [shape: f32[4,128], index: 1, kind: input, shape index: {}]
  %s2 = inlined_call_operand.vmem [shape: f32[1,128], index: 2, kind: input, shape index: {}]
  %s3 = inlined_call_operand.hbm [shape: f32[2,128], index: 3, kind: output, shape index: {}]
  %s4 = sld [smem:[#allocation0]]
  $region30: #{tpu_custom_call.1} parent=0
    _
  %s6 = ssub.s32 1, %s4
  %s7 = scalar_select 0, %s6, %s4
  $region1: #{tpu_custom_call.1} parent=0
    #allocation2 [shape = 'u8[8192]{0}', space=vmem, size = 0x2000, scoped, tag = 'input window, operand 0, single buffered']
    #allocation3 [shape = 's32[1]{0}', space=sflag, size = 0x4, scoped, tag = 'scoped memory for tpu_custom_call.1']
    #allocation4 [shape = 's32[1]{0}', space=sflag, size = 0x4, scoped, tag = 'scoped memory for tpu_custom_call.1']
    #allocation5 [shape = 'u8[2048]{0}', space=vmem, size = 0x800, scoped, tag = 'input window, operand 1, single buffered']
    #allocation6 [shape = 's32[1]{0}', space=sflag, size = 0x4, scoped, tag = 'scoped memory for tpu_custom_call.1']
    #allocation7 [shape = 'u8[1024]{0}', space=vmem, size = 0x400, scoped, tag = 'output window, operand 0, single buffered']
    %8 = vsyncpa [#allocation3], 0
    %9 = vsyncpa [#allocation6], 0
    %10 = vsyncpa [#allocation4], 0
    // Predicated region
    $region2: #{tpu_custom_call.1} parent=1 // pred_check
      _
    $region3: #{tpu_custom_call.1} parent=1 // pred_check_branch
      %12 = sbr.rel (0) target = $region5
    $region4: #{tpu_custom_call.1} parent=1 // pred_region
      %s14 = ssub.s32 256, 256
      %15 = vsyncadd [#allocation3], %s14
      %s16 = sshll.u32 [#allocation2], 4
      %s17 = int_to_ptr.vmem [resolvable:$true] %s16
      %22 = dma.hbm_to_vmem [thread:$0]  %s0, 256, %s17, [#allocation3], 128, 128, 8
    $region5: #{tpu_custom_call.1} parent=1 // pred_fallthru
      _
    // Predicated region
    $region6: #{tpu_custom_call.1} parent=1 // pred_check
      _
    $region7: #{tpu_custom_call.1} parent=1 // pred_check_branch
      %24 = sbr.rel (0) target = $region9
    $region8: #{tpu_custom_call.1} parent=1 // pred_region
      %s26 = ssub.s32 64, 64
      %27 = vsyncadd [#allocation6], %s26
      %s29 = sshll.u32 [#allocation5], 4
      %s30 = int_to_ptr.vmem [resolvable:$true] %s29
      %32 = dma.hbm_to_vmem [thread:$0]  %s1, 64, %s30, [#allocation6]
    $region9: #{tpu_custom_call.1} parent=1 // pred_fallthru
      _
    // Predicated region
    $region10: #{tpu_custom_call.1} parent=1 // pred_check
      _
    $region11: #{tpu_custom_call.1} parent=1 // pred_check_branch
      %34 = sbr.rel (0) target = $region13
    $region12: #{tpu_custom_call.1} parent=1 // pred_region
      _
    $region13: #{tpu_custom_call.1} parent=1 // pred_fallthru
      _
    // Predicated region
    $region14: #{tpu_custom_call.1} parent=1 // pred_check
      _
    $region15: #{tpu_custom_call.1} parent=1 // pred_check_branch
      %36 = sbr.rel (0) target = $region17
    $region16: #{tpu_custom_call.1} parent=1 // pred_region
      %37 = dma.done [#allocation3], 256
    $region17: #{tpu_custom_call.1} parent=1 // pred_fallthru
      _
    // Predicated region
    $region18: #{tpu_custom_call.1} parent=1 // pred_check
      _
    $region19: #{tpu_custom_call.1} parent=1 // pred_check_branch
      %39 = sbr.rel (0) target = $region21
    $region20: #{tpu_custom_call.1} parent=1 // pred_region
      %40 = dma.done [#allocation6], 64
    $region21: #{tpu_custom_call.1} parent=1 // pred_fallthru
      _
    %v41 = vld [vmem:[#allocation2] sm:$0xf]
    %v42 = vld [vmem:[#allocation2 + $0x8] sm:$0xf]
    %v43 = vld [vmem:[#allocation2 + $0x4] sm:$0xf]
    %v44 = vld [vmem:[#allocation2 + $0xc] sm:$0xf]
    %v45 = vadd.f32 %v41, %v43
    %v46 = vadd.f32 %v42, %v44
    %vm47 = vcmask 1043456
    %v48 = vsel %vm47, %v45, 0.0
    %49 = vadd.xlane.f32.xlu0 %v48
    %v50 = vpop.xlane.xlu0 %49
    %v51 = vsel %vm47, %v46, 0.0
    %52 = vadd.xlane.f32.xlu0 %v51
    %v53 = vpop.xlane.xlu0 %52
    %v54 = vmul.f32 %v50, 0.00390625
    %v55 = vmul.f32 %v53, 0.00390625
    %v56 = vld [vmem:[#allocation5] sm:$0xf]
    %v57 = vld [vmem:[%s2] sm:$0x1]
    %v59 = vlaneseq
    %v60 = vshrl.u32 %v59, 7
    %v61 = vsub.s32 0, %v60
    %v62 = vrot.slane %v57, %v61
    %v66 = vlaneseq
    %v67 = vand.u32 %v66, 127
    %v68 = vlaneseq
    %v69 = vshrl.u32 %v68, 7
    %v70 = vsub.s32 %v67, %v69
    %v71 = vrot.slane %v54, %v70
    %v72 = vlaneseq
    %v73 = vshrl.u32 %v72, 7
    %v74 = vsub.s32 %v67, %v73
    %v75 = vrot.slane %v55, %v74
    %vm76 = vcmask 1041409
    %v77 = vsel %vm76, %v75, %v71
    %vm78 = vcmask 31744
    %v79 = vsel %vm78, %v77, 0
    %v82 = vsel %vm47, %v56, 0
    %84 = vmatprep.subr.mxu0 0.0
    %85 = vmatpush1.msra.mxu0 %v82
    %86 = vmatprep.subr.mxu0 0.0
    %87 = vmatpush1.msra.mxu0 0.0
    %88 = vmatprep.subr.mxu0 0.0
    %89 = vmatpush1.msra.mxu0 0.0
    %90 = vmatprep.subr.mxu0 0.0
    %91 = vmatpush1.msra.mxu0 0.0
    %92 = vmatprep.subr.mxu0 0.0
    %93 = vmatpush1.msra.mxu0 0.0
    %94 = vmatprep.subr.mxu0 0.0
    %95 = vmatpush1.msra.mxu0 0.0
    %96 = vmatprep.subr.mxu0 0.0
    %97 = vmatpush1.msra.mxu0 0.0
    %98 = vmatprep.subr.mxu0 0.0
    %99 = vmatpush1.msra.mxu0 0.0
    %100 = vmatprep.subr.mxu0 0.0
    %101 = vmatpush1.msra.mxu0 0.0
    %102 = vmatprep.subr.mxu0 0.0
    %103 = vmatpush1.msra.mxu0 0.0
    %104 = vmatprep.subr.mxu0 0.0
    %105 = vmatpush1.msra.mxu0 0.0
    %106 = vmatprep.subr.mxu0 0.0
    %107 = vmatpush1.msra.mxu0 0.0
    %108 = vmatprep.subr.mxu0 0.0
    %109 = vmatpush1.msra.mxu0 0.0
    %110 = vmatprep.subr.mxu0 0.0
    %111 = vmatpush1.msra.mxu0 0.0
    %112 = vmatprep.subr.mxu0 0.0
    %113 = vmatpush1.msra.mxu0 0.0
    %114 = vmatprep.subr.mxu0 0.0
    %115 = vmatpush1.msra.mxu0 0.0
    %116 = vmatprep.subr.mxu0 0.0
    %117 = vmatpush1.msra.mxu0 0.0
    %118 = vmatprep.subr.mxu0 0.0
    %119 = vmatpush1.msra.mxu0 0.0
    %120 = vmatprep.subr.mxu0 0.0
    %121 = vmatpush1.msra.mxu0 0.0
    %122 = vmatprep.subr.mxu0 0.0
    %123 = vmatpush1.msra.mxu0 0.0
    %124 = vmatprep.subr.mxu0 0.0
    %125 = vmatpush1.msra.mxu0 0.0
    %126 = vmatprep.subr.mxu0 0.0
    %127 = vmatpush1.msra.mxu0 0.0
    %128 = vmatprep.subr.mxu0 0.0
    %129 = vmatpush1.msra.mxu0 0.0
    %130 = vmatprep.subr.mxu0 0.0
    %131 = vmatpush1.msra.mxu0 0.0
    %132 = vmatprep.subr.mxu0 0.0
    %133 = vmatpush1.msra.mxu0 0.0
    %134 = vmatprep.subr.mxu0 0.0
    %135 = vmatpush1.msra.mxu0 0.0
    %136 = vmatprep.subr.mxu0 0.0
    %137 = vmatpush1.msra.mxu0 0.0
    %138 = vmatprep.subr.mxu0 0.0
    %139 = vmatpush1.msra.mxu0 0.0
    %140 = vmatprep.subr.mxu0 0.0
    %141 = vmatpush1.msra.mxu0 0.0
    %142 = vmatprep.subr.mxu0 0.0
    %143 = vmatpush1.msra.mxu0 0.0
    %144 = vmatprep.subr.mxu0 0.0
    %145 = vmatpush1.msra.mxu0 0.0
    %146 = vmatprep.subr.mxu0 0.0
    %147 = vmatpush1.msra.mxu0 0.0
    %148 = vmatprep.mubr.f32.mxu0 0.0
    %149 = vmatmul.mubr.f32.gmra.mrb[0].mxu0 %v79
    %v150 = vpop.f32.mrb[0].mxu0
    %v151 = vadd.f32 %v62, %v150
    %v152 = vpop.f32.mrb[0].mxu0
    %153 = vdwg.mxu0
    %154 = vst [vmem:[#allocation7] sm:$0x3] %v151
    // Predicated region
    $region22: #{tpu_custom_call.1} parent=1 // pred_check
      _
    $region23: #{tpu_custom_call.1} parent=1 // pred_check_branch
      %156 = sbr.rel (0) target = $region25
    $region24: #{tpu_custom_call.1} parent=1 // pred_region
      %s158 = ssub.s32 32, 32
      %159 = vsyncadd [#allocation4], %s158
      %s161 = sshll.u32 [#allocation7], 4
      %s162 = int_to_ptr.vmem [resolvable:$true] %s161
      %164 = dma.vmem_to_hbm [thread:$0]  %s162, 32, %s3, [#allocation4]
    $region25: #{tpu_custom_call.1} parent=1 // pred_fallthru
      _
    // Predicated region
    $region26: #{tpu_custom_call.1} parent=1 // pred_check
      _
    $region27: #{tpu_custom_call.1} parent=1 // pred_check_branch
      %166 = sbr.rel (0) target = $region29
    $region28: #{tpu_custom_call.1} parent=1 // pred_region
      %167 = dma.done [#allocation4], 32
    $region29: #{tpu_custom_call.1} parent=1 // pred_fallthru
      _
    %168 = vsyncpa [#allocation3], 1
    %169 = vsyncpa [#allocation6], 1
    %170 = vsyncpa [#allocation4], 1

// kernel: tpu_custom_call.1
$region0: #{tpu_custom_call.1}
  #allocation0 [shape = 'u32[]', space=smem, size = 0x4, offset = 0x4, fixed_abs, tag = 'smem constant byte address 0x4 - core index']
  #allocation1 [shape = 'u32[144,128]{1,0:T(1,128)}', space=vmem, size = 0x12000, scoped, tag = 'internal scratch']
  %s0 = inlined_call_operand.hbm [shape: f32[2,4,256], index: 0, kind: input, shape index: {}]
  %s1 = inlined_call_operand.hbm [shape: f32[4,128], index: 1, kind: input, shape index: {}]
  %s2 = inlined_call_operand.vmem [shape: f32[1,128], index: 2, kind: input, shape index: {}]
  %s3 = inlined_call_operand.hbm [shape: f32[2,128], index: 3, kind: output, shape index: {}]
  %s4 = sld [smem:[#allocation0]]
  $region30: #{tpu_custom_call.1} parent=0
    _
  %s6 = ssub.s32 1, %s4
  %s7 = scalar_select 0, %s6, %s4
  $region1: #{tpu_custom_call.1} parent=0
    #allocation2 [shape = 'u8[8192]{0}', space=vmem, size = 0x2000, scoped, tag = 'input window, operand 0, single buffered']
    #allocation3 [shape = 's32[1]{0}', space=sflag, size = 0x4, scoped, tag = 'scoped memory for tpu_custom_call.1']
    #allocation4 [shape = 's32[1]{0}', space=sflag, size = 0x4, scoped, tag = 'scoped memory for tpu_custom_call.1']
    #allocation5 [shape = 'u8[2048]{0}', space=vmem, size = 0x800, scoped, tag = 'input window, operand 1, single buffered']
    #allocation6 [shape = 's32[1]{0}', space=sflag, size = 0x4, scoped, tag = 'scoped memory for tpu_custom_call.1']
    #allocation7 [shape = 'u8[1024]{0}', space=vmem, size = 0x400, scoped, tag = 'output window, operand 0, single buffered']
    %8 = vsyncpa [#allocation3], 0
    %9 = vsyncpa [#allocation6], 0
    %10 = vsyncpa [#allocation4], 0
    // Predicated region
    $region2: #{tpu_custom_call.1} parent=1 // pred_check
      _
    $region3: #{tpu_custom_call.1} parent=1 // pred_check_branch
      %12 = sbr.rel (0) target = $region5
    $region4: #{tpu_custom_call.1} parent=1 // pred_region
      %s14 = ssub.s32 256, 256
      %15 = vsyncadd [#allocation3], %s14
      %s16 = sshll.u32 [#allocation2], 4
      %s17 = int_to_ptr.vmem [resolvable:$true] %s16
      %22 = dma.hbm_to_vmem [thread:$0]  %s0, 256, %s17, [#allocation3], 128, 128, 8
    $region5: #{tpu_custom_call.1} parent=1 // pred_fallthru
      _
    // Predicated region
    $region6: #{tpu_custom_call.1} parent=1 // pred_check
      _
    $region7: #{tpu_custom_call.1} parent=1 // pred_check_branch
      %24 = sbr.rel (0) target = $region9
    $region8: #{tpu_custom_call.1} parent=1 // pred_region
      %s26 = ssub.s32 64, 64
      %27 = vsyncadd [#allocation6], %s26
      %s29 = sshll.u32 [#allocation5], 4
      %s30 = int_to_ptr.vmem [resolvable:$true] %s29
      %32 = dma.hbm_to_vmem [thread:$0]  %s1, 64, %s30, [#allocation6]
    $region9: #{tpu_custom_call.1} parent=1 // pred_fallthru
      _
    // Predicated region
    $region10: #{tpu_custom_call.1} parent=1 // pred_check
      _
    $region11: #{tpu_custom_call.1} parent=1 // pred_check_branch
      %34 = sbr.rel (0) target = $region13
    $region12: #{tpu_custom_call.1} parent=1 // pred_region
      _
    $region13: #{tpu_custom_call.1} parent=1 // pred_fallthru
      _
    // Predicated region
    $region14: #{tpu_custom_call.1} parent=1 // pred_check
      _
    $region15: #{tpu_custom_call.1} parent=1 // pred_check_branch
      %36 = sbr.rel (0) target = $region17
    $region16: #{tpu_custom_call.1} parent=1 // pred_region
      %37 = dma.done [#allocation3], 256
    $region17: #{tpu_custom_call.1} parent=1 // pred_fallthru
      _
    // Predicated region
    $region18: #{tpu_custom_call.1} parent=1 // pred_check
      _
    $region19: #{tpu_custom_call.1} parent=1 // pred_check_branch
      %39 = sbr.rel (0) target = $region21
    $region20: #{tpu_custom_call.1} parent=1 // pred_region
      %40 = dma.done [#allocation6], 64
    $region21: #{tpu_custom_call.1} parent=1 // pred_fallthru
      _
    %v41 = vld [vmem:[#allocation2] sm:$0xf]
    %v42 = vld [vmem:[#allocation2 + $0x8] sm:$0xf]
    %v43 = vld [vmem:[#allocation2 + $0x4] sm:$0xf]
    %v44 = vld [vmem:[#allocation2 + $0xc] sm:$0xf]
    %v45 = vadd.f32 %v41, %v43
    %v46 = vadd.f32 %v42, %v44
    %vm47 = vcmask 1043456
    %v48 = vsel %vm47, %v45, 0.0
    %49 = vadd.xlane.f32.xlu0 %v48
    %v50 = vpop.xlane.xlu0 %49
    %v51 = vsel %vm47, %v46, 0.0
    %52 = vadd.xlane.f32.xlu0 %v51
    %v53 = vpop.xlane.xlu0 %52
    %v54 = vmul.f32 %v50, 0.00390625
    %v55 = vmul.f32 %v53, 0.00390625
    %v56 = vld [vmem:[#allocation5] sm:$0xf]
    %v57 = vld [vmem:[%s2] sm:$0x1]
    %v59 = vlaneseq
    %v60 = vshrl.u32 %v59, 7
    %v61 = vsub.s32 0, %v60
    %v62 = vrot.slane %v57, %v61
    %v66 = vlaneseq
    %v67 = vand.u32 %v66, 127
    %v68 = vlaneseq
    %v69 = vshrl.u32 %v68, 7
    %v70 = vsub.s32 %v67, %v69
    %v71 = vrot.slane %v54, %v70
    %v72 = vlaneseq
    %v73 = vshrl.u32 %v72, 7
    %v74 = vsub.s32 %v67, %v73
    %v75 = vrot.slane %v55, %v74
    %vm76 = vcmask 1041409
    %v77 = vsel %vm76, %v75, %v71
    %vm78 = vcmask 31744
    %v79 = vsel %vm78, %v77, 0
    %v82 = vsel %vm47, %v56, 0
    %84 = vmatprep.subr.mxu0 0.0
    %85 = vmatpush1.msra.mxu0 %v82
    %86 = vmatprep.subr.mxu0 0.0
    %87 = vmatpush1.msra.mxu0 0.0
    %88 = vmatprep.subr.mxu0 0.0
    %89 = vmatpush1.msra.mxu0 0.0
    %90 = vmatprep.subr.mxu0 0.0
    %91 = vmatpush1.msra.mxu0 0.0
    %92 = vmatprep.subr.mxu0 0.0
    %93 = vmatpush1.msra.mxu0 0.0
    %94 = vmatprep.subr.mxu0 0.0
    %95 = vmatpush1.msra.mxu0 0.0
    %96 = vmatprep.subr.mxu0 0.0
    %97 = vmatpush1.msra.mxu0 0.0
    %98 = vmatprep.subr.mxu0 0.0
    %99 = vmatpush1.msra.mxu0 0.0
    %100 = vmatprep.subr.mxu0 0.0
    %101 = vmatpush1.msra.mxu0 0.0
    %102 = vmatprep.subr.mxu0 0.0
    %103 = vmatpush1.msra.mxu0 0.0
    %104 = vmatprep.subr.mxu0 0.0
    %105 = vmatpush1.msra.mxu0 0.0
    %106 = vmatprep.subr.mxu0 0.0
    %107 = vmatpush1.msra.mxu0 0.0
    %108 = vmatprep.subr.mxu0 0.0
    %109 = vmatpush1.msra.mxu0 0.0
    %110 = vmatprep.subr.mxu0 0.0
    %111 = vmatpush1.msra.mxu0 0.0
    %112 = vmatprep.subr.mxu0 0.0
    %113 = vmatpush1.msra.mxu0 0.0
    %114 = vmatprep.subr.mxu0 0.0
    %115 = vmatpush1.msra.mxu0 0.0
    %116 = vmatprep.subr.mxu0 0.0
    %117 = vmatpush1.msra.mxu0 0.0
    %118 = vmatprep.subr.mxu0 0.0
    %119 = vmatpush1.msra.mxu0 0.0
    %120 = vmatprep.subr.mxu0 0.0
    %121 = vmatpush1.msra.mxu0 0.0
    %122 = vmatprep.subr.mxu0 0.0
    %123 = vmatpush1.msra.mxu0 0.0
    %124 = vmatprep.subr.mxu0 0.0
    %125 = vmatpush1.msra.mxu0 0.0
    %126 = vmatprep.subr.mxu0 0.0
    %127 = vmatpush1.msra.mxu0 0.0
    %128 = vmatprep.subr.mxu0 0.0
    %129 = vmatpush1.msra.mxu0 0.0
    %130 = vmatprep.subr.mxu0 0.0
    %131 = vmatpush1.msra.mxu0 0.0
    %132 = vmatprep.subr.mxu0 0.0
    %133 = vmatpush1.msra.mxu0 0.0
    %134 = vmatprep.subr.mxu0 0.0
    %135 = vmatpush1.msra.mxu0 0.0
    %136 = vmatprep.subr.mxu0 0.0
    %137 = vmatpush1.msra.mxu0 0.0
    %138 = vmatprep.subr.mxu0 0.0
    %139 = vmatpush1.msra.mxu0 0.0
    %140 = vmatprep.subr.mxu0 0.0
    %141 = vmatpush1.msra.mxu0 0.0
    %142 = vmatprep.subr.mxu0 0.0
    %143 = vmatpush1.msra.mxu0 0.0
    %144 = vmatprep.subr.mxu0 0.0
    %145 = vmatpush1.msra.mxu0 0.0
    %146 = vmatprep.subr.mxu0 0.0
    %147 = vmatpush1.msra.mxu0 0.0
    %148 = vmatprep.mubr.f32.mxu0 0.0
    %149 = vmatmul.mubr.f32.gmra.mrb[0].mxu0 %v79
    %v150 = vpop.f32.mrb[0].mxu0
    %v151 = vadd.f32 %v62, %v150
    %v152 = vpop.f32.mrb[0].mxu0
    %153 = vdwg.mxu0
    %154 = vst [vmem:[#allocation7] sm:$0x3] %v151
    // Predicated region
    $region22: #{tpu_custom_call.1} parent=1 // pred_check
      _
    $region23: #{tpu_custom_call.1} parent=1 // pred_check_branch
      %156 = sbr.rel (0) target = $region25
    $region24: #{tpu_custom_call.1} parent=1 // pred_region
      %s158 = ssub.s32 32, 32
      %159 = vsyncadd [#allocation4], %s158
      %s161 = sshll.u32 [#allocation7], 4
      %s162 = int_to_ptr.vmem [resolvable:$true] %s161
      %164 = dma.vmem_to_hbm [thread:$0]  %s162, 32, %s3, [#allocation4]
    $region25: #{tpu_custom_call.1} parent=1 // pred_fallthru
      _
    // Predicated region
    $region26: #{tpu_custom_call.1} parent=1 // pred_check
      _
    $region27: #{tpu_custom_call.1} parent=1 // pred_check_branch
      %166 = sbr.rel (0) target = $region29
    $region28: #{tpu_custom_call.1} parent=1 // pred_region
      %167 = dma.done [#allocation4], 32
    $region29: #{tpu_custom_call.1} parent=1 // pred_fallthru
      _
    %168 = vsyncpa [#allocation3], 1
    %169 = vsyncpa [#allocation6], 1
    %170 = vsyncpa [#allocation4], 1

</llo_original>
